<compile_context>
chip_gen: v5e
topology: v5e:2x2
jax: 0.10.0
libtpu: 0.0.40
codegen_flags: <defaults>
</compile_context>

<pallas_src>
import functools
import math

import jax
import jax.numpy as jnp
from jax.experimental import pallas as pl
from jax.experimental.pallas import tpu as pltpu

LANES = 128
SUBLANES = 8


# ----------------------------- kernel ----------------------------------------


def norm_kernel(x_ref, alpha_ref, bias_ref, o_ref, *, eps, d_model, d_padded):
    # x_ref: (tm, Dp) tile of independent rows; normalize each row over the true
    # feature dim d_model. I/O stays in the input dtype, statistics in f32.
    x = x_ref[...].astype(jnp.float32)

    inv_n = 1.0 / d_model
    # torch.Tensor.std defaults to Bessel's correction (divide by N-1).
    # d_model == 1 gives NaN in torch; keep the divisor finite so tracing works.
    inv_nm1 = 1.0 / (d_model - 1) if d_model > 1 else 1.0

    if d_padded != d_model:
        # Padded lanes were zero-filled in the wrapper, so sum(x) is already
        # correct; only the centered squares need an explicit lane mask.
        lane = jax.lax.broadcasted_iota(jnp.int32, (1, d_padded), 1)
        valid = lane < d_model
        mean = jnp.sum(x, axis=-1, keepdims=True) * inv_n
        xc = x - mean
        xc_masked = jnp.where(valid, xc, 0.0)
        var = jnp.sum(xc_masked * xc_masked, axis=-1, keepdims=True) * inv_nm1
    else:
        mean = jnp.sum(x, axis=-1, keepdims=True) * inv_n
        xc = x - mean
        var = jnp.sum(xc * xc, axis=-1, keepdims=True) * inv_nm1

    std = jnp.sqrt(var)
    # Exact divide: one per row, negligible; approx reciprocal (~1e-3 rel err)
    # would be marginal against the 1e-4 parity tolerance.
    inv = 1.0 / (std + eps)
    y = alpha_ref[...] * (xc * inv) + bias_ref[...]
    o_ref[...] = y.astype(o_ref.dtype)


# ----------------------------- wrapper ----------------------------------------


def _row_tile(m_rows, d_padded):
    """Rows per tile: ~2 MiB f32 x-tile, multiple of 8 sublanes, >=4 grid steps
    when the row count allows (v7x megacore + pipelining)."""
    target_bytes = 2 << 20
    tm = max((target_bytes // (4 * d_padded)) // SUBLANES * SUBLANES, SUBLANES)
    quarter = (pl.cdiv(m_rows, 4) // SUBLANES) * SUBLANES
    if quarter >= SUBLANES:
        tm = min(tm, quarter)
    if tm >= m_rows:
        tm = m_rows  # single full block (also legal when m_rows % 8 != 0)
    return tm


def pallas_norm_layer(x, alpha, bias, eps=1e-6):
    """x: [..., D]  alpha, bias: [D]  ->  [..., D], normalized over last dim.
    Output dtype follows x.dtype; statistics are computed in f32."""
    orig_shape = x.shape
    orig_dtype = x.dtype
    D = orig_shape[-1]
    M = math.prod(orig_shape[:-1]) if len(orig_shape) > 1 else 1
    x2 = x.reshape(M, D)

    # Lane-dense feature dim: pad to a multiple of 128 so stores are unmasked.
    Dp = ((D + LANES - 1) // LANES) * LANES
    alpha_f = alpha.astype(jnp.float32).reshape(1, D)
    bias_f = bias.astype(jnp.float32).reshape(1, D)
    if Dp != D:
        x2 = jnp.pad(x2, ((0, 0), (0, Dp - D)))
        alpha_f = jnp.pad(alpha_f, ((0, 0), (0, Dp - D)))
        bias_f = jnp.pad(bias_f, ((0, 0), (0, Dp - D)))

    tm = _row_tile(M, Dp)
    grid = (pl.cdiv(M, tm),)

    # VMEM budget: double-buffered input + output tiles + params. Raise the
    # scoped limit only when the smallest per-generation default (16 MiB on
    # v5e) would be tight; cap below v7x's 64 MiB physical VMEM.
    itemsize = jnp.dtype(orig_dtype).itemsize
    tile_bytes = tm * Dp * itemsize
    need = 2 * tile_bytes + 2 * tile_bytes + 2 * (2 * Dp * 4)
    cp_kwargs = dict(dimension_semantics=("parallel",))
    if need > 12 * (1 << 20):
        cp_kwargs["vmem_limit_bytes"] = min(int(need * 2), 48 * (1 << 20))

    out = pl.pallas_call(
        functools.partial(norm_kernel, eps=eps, d_model=D, d_padded=Dp),
        grid=grid,
        out_shape=jax.ShapeDtypeStruct((M, Dp), orig_dtype),
        in_specs=[
            pl.BlockSpec((tm, Dp), lambda i: (i, 0)),
            pl.BlockSpec((1, Dp), lambda i: (0, 0)),
            pl.BlockSpec((1, Dp), lambda i: (0, 0)),
        ],
        out_specs=pl.BlockSpec((tm, Dp), lambda i: (i, 0)),
        compiler_params=pltpu.CompilerParams(**cp_kwargs),
    )(x2, alpha_f, bias_f)

    if Dp != D:
        out = out[:, :D]
    return out.reshape(orig_shape)


# ----------------------------- reference (pure JAX) ----------------------------


def reference_norm(x, alpha, bias, eps=1e-6):
    mean = jnp.mean(x, axis=-1, keepdims=True)
    std = jnp.std(x, axis=-1, keepdims=True, ddof=1)  # unbiased, like torch.std
    return alpha * (x - mean) / (std + eps) + bias


# ----------------------------- main --------------------------------------------


if __name__ == "__main__":
    key = jax.random.PRNGKey(0)
    kx, ka, kb, kx2 = jax.random.split(key, 4)

    # Case 1: lane-dense feature dim (multiple of 128), f32 I/O.
    B, S, D = 2, 8, 128
    x = jax.random.normal(kx, (B, S, D), jnp.float32)
    alpha = 1.0 + 0.1 * jax.random.normal(ka, (D,), jnp.float32)
    bias = 0.1 * jax.random.normal(kb, (D,), jnp.float32)
    out = jax.block_until_ready(pallas_norm_layer(x, alpha, bias, eps=1e-6))
    ref = reference_norm(x, alpha, bias, eps=1e-6)
    assert out.shape == x.shape and out.dtype == x.dtype
    assert jnp.allclose(out, ref, atol=1e-4, rtol=1e-4), "f32 mismatch vs. reference"

    # Case 2: D not a multiple of 128 (exercises padded / masked-stats path).
    D2 = 96
    x_b = jax.random.normal(kx2, (B, S, D2), jnp.float32)
    a_b = jnp.ones((D2,), jnp.float32)
    b_b = jnp.zeros((D2,), jnp.float32)
    out_b = jax.block_until_ready(pallas_norm_layer(x_b, a_b, b_b, eps=1e-6))
    ref_b = reference_norm(x_b, a_b, b_b, eps=1e-6)
    assert out_b.shape == x_b.shape
    assert jnp.allclose(out_b, ref_b, atol=1e-4, rtol=1e-4), "padded-D mismatch"

    # Case 3: bf16 I/O (stats still f32 in-kernel); loose tolerance for bf16 quantization.
    x_h = x.astype(jnp.bfloat16)
    out_h = jax.block_until_ready(pallas_norm_layer(x_h, alpha, bias, eps=1e-6))
    assert out_h.dtype == jnp.bfloat16
    assert jnp.allclose(out_h.astype(jnp.float32), ref, atol=1e-1, rtol=5e-2), "bf16 mismatch"

    print("KERNEL_OK")
</pallas_src>

<mosaic_0001>
module attributes {stable_mosaic.version = 11 : i64} {
  func.func @norm_kernel(%arg0: i32, %arg1: memref<16x128xf32, #tpu.memory_space<vmem>>, %arg2: memref<1x128xf32, #tpu.memory_space<vmem>>, %arg3: memref<1x128xf32, #tpu.memory_space<vmem>>, %arg4: memref<16x128xf32, #tpu.memory_space<vmem>>) attributes {dimension_semantics = [#tpu.dimension_semantics<parallel>], iteration_bounds = array<i64: 1>, scalar_prefetch = 0 : i64, scratch_operands = 0 : i64, tpu.core_type = #tpu.core_type<tc>, window_params = [{transform_indices = @transform_0, window_bounds = array<i64: 16, 128>}, {pipeline_mode = #tpu.pipeline_mode<synchronous>, transform_indices = @transform_1, window_bounds = array<i64: 1, 128>}, {pipeline_mode = #tpu.pipeline_mode<synchronous>, transform_indices = @transform_2, window_bounds = array<i64: 1, 128>}, {transform_indices = @transform_3, window_bounds = array<i64: 16, 128>}]} {
    %c0 = arith.constant 0 : index
    %c0_0 = arith.constant 0 : index
    %0 = vector.load %arg1[%c0, %c0_0] : memref<16x128xf32, #tpu.memory_space<vmem>>, vector<16x128xf32>
    %cst = arith.constant dense<0.000000e+00> : vector<16xf32>
    %1 = vector.multi_reduction <add>, %0, %cst [1] : vector<16x128xf32> to vector<16xf32>
    %2 = vector.shape_cast %1 : vector<16xf32> to vector<16x1xf32>
    %cst_1 = arith.constant 7.812500e-03 : f32
    %3 = vector.broadcast %cst_1 : f32 to vector<16x1xf32>
    %4 = arith.mulf %2, %3 : vector<16x1xf32>
    %5 = vector.broadcast %4 : vector<16x1xf32> to vector<16x128xf32>
    %6 = arith.subf %0, %5 : vector<16x128xf32>
    %7 = arith.mulf %6, %6 : vector<16x128xf32>
    %cst_2 = arith.constant dense<0.000000e+00> : vector<16xf32>
    %8 = vector.multi_reduction <add>, %7, %cst_2 [1] : vector<16x128xf32> to vector<16xf32>
    %9 = vector.shape_cast %8 : vector<16xf32> to vector<16x1xf32>
    %cst_3 = arith.constant 0.00787401571 : f32
    %10 = vector.broadcast %cst_3 : f32 to vector<16x1xf32>
    %11 = arith.mulf %9, %10 : vector<16x1xf32>
    %12 = math.sqrt %11 : vector<16x1xf32>
    %cst_4 = arith.constant 9.99999997E-7 : f32
    %13 = vector.broadcast %cst_4 : f32 to vector<16x1xf32>
    %14 = arith.addf %12, %13 : vector<16x1xf32>
    %cst_5 = arith.constant 1.000000e+00 : f32
    %15 = vector.broadcast %cst_5 : f32 to vector<16x1xf32>
    %16 = arith.divf %15, %14 : vector<16x1xf32>
    %c0_6 = arith.constant 0 : index
    %c0_7 = arith.constant 0 : index
    %17 = vector.load %arg2[%c0_6, %c0_7] : memref<1x128xf32, #tpu.memory_space<vmem>>, vector<1x128xf32>
    %18 = vector.broadcast %16 : vector<16x1xf32> to vector<16x128xf32>
    %19 = arith.mulf %6, %18 : vector<16x128xf32>
    %20 = vector.broadcast %17 : vector<1x128xf32> to vector<16x128xf32>
    %21 = arith.mulf %20, %19 : vector<16x128xf32>
    %c0_8 = arith.constant 0 : index
    %c0_9 = arith.constant 0 : index
    %22 = vector.load %arg3[%c0_8, %c0_9] : memref<1x128xf32, #tpu.memory_space<vmem>>, vector<1x128xf32>
    %23 = vector.broadcast %22 : vector<1x128xf32> to vector<16x128xf32>
    %24 = arith.addf %21, %23 : vector<16x128xf32>
    %c0_10 = arith.constant 0 : index
    %c0_11 = arith.constant 0 : index
    %25 = vector.load %arg4[%c0_10, %c0_11] : memref<16x128xf32, #tpu.memory_space<vmem>>, vector<16x128xf32>
    tpu.vector_store %arg4[%c0_10, %c0_11], %24 {strides = array<i32>} : memref<16x128xf32, #tpu.memory_space<vmem>>, vector<16x128xf32>,
    return
  }
  func.func @transform_0(%arg0: i32) -> (i32, i32) {
    %c0_i32 = arith.constant 0 : i32
    %c0_i32_0 = arith.constant 0 : i32
    return %arg0, %c0_i32 : i32, i32
  }
  func.func @transform_1(%arg0: i32) -> (i32, i32) {
    %c0_i32 = arith.constant 0 : i32
    %c0_i32_0 = arith.constant 0 : i32
    %c0_i32_1 = arith.constant 0 : i32
    return %c0_i32, %c0_i32_0 : i32, i32
  }
  func.func @transform_2(%arg0: i32) -> (i32, i32) {
    %c0_i32 = arith.constant 0 : i32
    %c0_i32_0 = arith.constant 0 : i32
    %c0_i32_1 = arith.constant 0 : i32
    return %c0_i32, %c0_i32_0 : i32, i32
  }
  func.func @transform_3(%arg0: i32) -> (i32, i32) {
    %c0_i32 = arith.constant 0 : i32
    %c0_i32_0 = arith.constant 0 : i32
    return %arg0, %c0_i32 : i32, i32
  }
}

</mosaic_0001>

<llo_original>
// kernel: tpu_custom_call.1
$region0: #{tpu_custom_call.1}
  #allocation0 [shape = 'u32[]', space=smem, size = 0x4, offset = 0x4, fixed_abs, tag = 'smem constant byte address 0x4 - core index']
  #allocation1 [shape = 'u32[72,128]{1,0:T(1,128)}', space=vmem, size = 0x9000, scoped, tag = 'internal scratch']
  %s0 = inlined_call_operand.hbm [shape: f32[16,128], index: 0, kind: input, shape index: {}]
  %s1 = inlined_call_operand.hbm [shape: f32[1,128], index: 1, kind: input, shape index: {}]
  %s2 = inlined_call_operand.vmem [shape: f32[1,128], index: 2, kind: input, shape index: {}]
  %s3 = inlined_call_operand.hbm [shape: f32[16,128], index: 3, kind: output, shape index: {}]
  %s4 = sld [smem:[#allocation0]]
  $region30: #{tpu_custom_call.1} parent=0
    _
  %s6 = ssub.s32 1, %s4
  %s7 = scalar_select 0, %s6, %s4
  $region1: #{tpu_custom_call.1} parent=0
    #allocation2 [shape = 'u8[8192]{0}', space=vmem, size = 0x2000, scoped, tag = 'input window, operand 0, single buffered']
    #allocation3 [shape = 's32[1]{0}', space=sflag, size = 0x4, scoped, tag = 'scoped memory for tpu_custom_call.1']
    #allocation4 [shape = 's32[1]{0}', space=sflag, size = 0x4, scoped, tag = 'scoped memory for tpu_custom_call.1']
    #allocation5 [shape = 'u8[512]{0}', space=vmem, size = 0x400, scoped, tag = 'input window, operand 1, single buffered']
    #allocation6 [shape = 's32[1]{0}', space=sflag, size = 0x4, scoped, tag = 'scoped memory for tpu_custom_call.1']
    #allocation7 [shape = 'u8[8192]{0}', space=vmem, size = 0x2000, scoped, tag = 'output window, operand 0, single buffered']
    %8 = vsyncpa [#allocation3], 0
    %9 = vsyncpa [#allocation6], 0
    %10 = vsyncpa [#allocation4], 0
    // Predicated region
    $region2: #{tpu_custom_call.1} parent=1 // pred_check
      _
    $region3: #{tpu_custom_call.1} parent=1 // pred_check_branch
      %12 = sbr.rel (0) target = $region5
    $region4: #{tpu_custom_call.1} parent=1 // pred_region
      %14 = vsyncadd [#allocation3], 0
      %s15 = sshll.u32 %s0, 4
      %s16 = int_to_ptr.hbm [resolvable:$true] %s15
      %s17 = sshll.u32 [#allocation2], 4
      %s18 = int_to_ptr.vmem [resolvable:$true] %s17
      %23 = dma.hbm_to_vmem [thread:$0]  %s16, 256, %s18, [#allocation3], 128, 128, 8
    $region5: #{tpu_custom_call.1} parent=1 // pred_fallthru
      _
    // Predicated region
    $region6: #{tpu_custom_call.1} parent=1 // pred_check
      _
    $region7: #{tpu_custom_call.1} parent=1 // pred_check_branch
      %25 = sbr.rel (0) target = $region9
    $region8: #{tpu_custom_call.1} parent=1 // pred_region
      %27 = vsyncadd [#allocation6], 0
      %s29 = sshll.u32 %s1, 4
      %s30 = int_to_ptr.hbm [resolvable:$true] %s29
      %s31 = sshll.u32 [#allocation5], 4
      %s32 = int_to_ptr.vmem [resolvable:$true] %s31
      %34 = dma.hbm_to_vmem [thread:$0]  %s30, 16, %s32, [#allocation6]
    $region9: #{tpu_custom_call.1} parent=1 // pred_fallthru
      _
    // Predicated region
    $region10: #{tpu_custom_call.1} parent=1 // pred_check
      _
    $region11: #{tpu_custom_call.1} parent=1 // pred_check_branch
      %36 = sbr.rel (0) target = $region13
    $region12: #{tpu_custom_call.1} parent=1 // pred_region
      _
    $region13: #{tpu_custom_call.1} parent=1 // pred_fallthru
      _
    // Predicated region
    $region14: #{tpu_custom_call.1} parent=1 // pred_check
      _
    $region15: #{tpu_custom_call.1} parent=1 // pred_check_branch
      %38 = sbr.rel (0) target = $region17
    $region16: #{tpu_custom_call.1} parent=1 // pred_region
      %40 = dma.done [#allocation3], 256
    $region17: #{tpu_custom_call.1} parent=1 // pred_fallthru
      _
    // Predicated region
    $region18: #{tpu_custom_call.1} parent=1 // pred_check
      _
    $region19: #{tpu_custom_call.1} parent=1 // pred_check_branch
      %42 = sbr.rel (0) target = $region21
    $region20: #{tpu_custom_call.1} parent=1 // pred_region
      %44 = dma.done [#allocation6], 16
    $region21: #{tpu_custom_call.1} parent=1 // pred_fallthru
      _
    %v45 = vld [vmem:[#allocation2] sm:$0xff]
    %v46 = vld [vmem:[#allocation2 + $0x8] sm:$0xff]
    %47 = vadd.xlane.f32.xlu0 %v45
    %v48 = vpop.xlane.xlu0 %47
    %49 = vadd.xlane.f32.xlu0 %v46
    %v50 = vpop.xlane.xlu0 %49
    %v51 = vmul.f32 %v48, 0.0078125
    %v52 = vmul.f32 %v50, 0.0078125
    %v53 = vsub.f32 %v45, %v51
    %v54 = vsub.f32 %v46, %v52
    %v55 = vmul.f32 %v53, %v53
    %v56 = vmul.f32 %v54, %v54
    %57 = vadd.xlane.f32.xlu0 %v55
    %v58 = vpop.xlane.xlu0 %57
    %59 = vadd.xlane.f32.xlu0 %v56
    %v60 = vpop.xlane.xlu0 %59
    %v61 = vmul.f32 %v58, 0.007874016
    %v62 = vmul.f32 %v60, 0.007874016
    %v63 = vrsqrt.pop %v61
    %v64 = vmul.f32 %v63, %v61
    %v65 = vmul.f32 %v64, %v63
    %v66 = vmul.f32 0.5, %v65
    %v67 = vsub.f32 1.5, %v66
    %v68 = vmul.f32 %v63, %v67
    %v69 = vmul.f32 %v61, %v68
    %vm70 = vcmp.eq.f32.partialorder %v61, inf
    %v71 = vsel %vm70, %v61, %v69
    %vm72 = vcmp.eq.f32.partialorder %v61, 0.0
    %v73 = vand.u32 %v61, 2147483648
    %v74 = vsel %vm72, %v73, %v71
    %v75 = vrsqrt.pop %v62
    %v76 = vmul.f32 %v75, %v62
    %v77 = vmul.f32 %v76, %v75
    %v78 = vmul.f32 0.5, %v77
    %v79 = vsub.f32 1.5, %v78
    %v80 = vmul.f32 %v75, %v79
    %v81 = vmul.f32 %v62, %v80
    %vm82 = vcmp.eq.f32.partialorder %v62, inf
    %v83 = vsel %vm82, %v62, %v81
    %vm84 = vcmp.eq.f32.partialorder %v62, 0.0
    %v85 = vand.u32 %v62, 2147483648
    %v86 = vsel %vm84, %v85, %v83
    %v87 = vadd.f32 %v74, 1e-06
    %v88 = vadd.f32 %v86, 1e-06
    %v89 = vrcp.pop %v87
    %v90 = vmul.f32 %v87, %v89
    %v91 = vsub.f32 1.0, %v90
    %v92 = vmul.f32 %v89, %v91
    %v93 = vadd.f32 %v89, %v92
    %vm94 = vweird.f32 %v87
    %vm95 = vweird.f32 %v89
    %vm96 = vmor %vm94, %vm95
    %v97 = vsel %vm96, %v89, %v93
    %v98 = vand.u32 2147483647, %v87
    %vm99 = vcmp.eq.f32.partialorder %v98, 8.507059e+37
    %v100 = vand.u32 %v87, 2147483648
    %v101 = vor.u32 1.1754944e-38, %v100
    %v102 = vsel %vm99, %v101, %v97
    %v103 = vmul.f32 1.0, %v102
    %v104 = vrcp.pop %v88
    %v105 = vmul.f32 %v88, %v104
    %v106 = vsub.f32 1.0, %v105
    %v107 = vmul.f32 %v104, %v106
    %v108 = vadd.f32 %v104, %v107
    %vm109 = vweird.f32 %v88
    %vm110 = vweird.f32 %v104
    %vm111 = vmor %vm109, %vm110
    %v112 = vsel %vm111, %v104, %v108
    %v113 = vand.u32 2147483647, %v88
    %vm114 = vcmp.eq.f32.partialorder %v113, 8.507059e+37
    %v115 = vand.u32 %v88, 2147483648
    %v116 = vor.u32 1.1754944e-38, %v115
    %v117 = vsel %vm114, %v116, %v112
    %v118 = vmul.f32 1.0, %v117
    %v119 = vld [vmem:[#allocation5] sm:$0x1]
    %v120 = vmul.f32 %v53, %v103
    %v121 = vmul.f32 %v54, %v118
    %v123 = vperm.slane %v119, 0
    %v125 = vmul.f32 %v123, %v120
    %v126 = vmul.f32 %v123, %v121
    %v127 = vld [vmem:[%s2] sm:$0x1]
    %v129 = vperm.slane %v127, 0
    %v131 = vadd.f32 %v125, %v129
    %v132 = vadd.f32 %v126, %v129
    %133 = vst [vmem:[#allocation7] sm:$0xff] %v131
    %134 = vst [vmem:[#allocation7 + $0x8] sm:$0xff] %v132
    // Predicated region
    $region22: #{tpu_custom_call.1} parent=1 // pred_check
      _
    $region23: #{tpu_custom_call.1} parent=1 // pred_check_branch
      %136 = sbr.rel (0) target = $region25
    $region24: #{tpu_custom_call.1} parent=1 // pred_region
      %138 = vsyncadd [#allocation4], 0
      %s139 = sshll.u32 [#allocation7], 4
      %s140 = int_to_ptr.vmem [resolvable:$true] %s139
      %s141 = sshll.u32 %s3, 4
      %s142 = int_to_ptr.hbm [resolvable:$true] %s141
      %147 = dma.vmem_to_hbm [thread:$0]  %s140, 256, %s142, [#allocation4], 128, 128, 8
    $region25: #{tpu_custom_call.1} parent=1 // pred_fallthru
      _
    // Predicated region
    $region26: #{tpu_custom_call.1} parent=1 // pred_check
      _
    $region27: #{tpu_custom_call.1} parent=1 // pred_check_branch
      %149 = sbr.rel (0) target = $region29
    $region28: #{tpu_custom_call.1} parent=1 // pred_region
      %151 = dma.done [#allocation4], 256
    $region29: #{tpu_custom_call.1} parent=1 // pred_fallthru
      _
    %152 = vsyncpa [#allocation3], 1
    %153 = vsyncpa [#allocation6], 1
    %154 = vsyncpa [#allocation4], 1

</llo_original>
